<compile_context>
chip_gen: v7x
topology: tpu7x:2x2x1
jax: 0.10.0
libtpu: 0.0.40
codegen_flags: <defaults>
</compile_context>

<pallas_src>
import functools

import jax
import jax.numpy as jnp
from jax.experimental import pallas as pl
from jax.experimental.pallas import tpu as pltpu


# ----------------------------------------------------------------------------
# Kernels
# ----------------------------------------------------------------------------
def _head_resident_kernel(x_ref, w1_ref, b1_ref, w2_ref, b2_ref, out_ref):
    """One batch tile; W1/W2/biases are VMEM-resident (constant index_maps)."""
    # dense: (bb, H) @ (H, H), f32 accumulation, result stays in vregs.
    h = jnp.dot(x_ref[...], w1_ref[...], preferred_element_type=jnp.float32)
    h = jnp.tanh(h + b1_ref[...].astype(jnp.float32))
    # out_proj: operands in the weight dtype (bf16 fast path), f32 accumulate.
    y = jnp.dot(h.astype(w2_ref.dtype), w2_ref[...],
                preferred_element_type=jnp.float32)
    out_ref[...] = (y + b2_ref[...].astype(jnp.float32)).astype(out_ref.dtype)


def _head_k_tiled_kernel(x_ref, w1_ref, b1_ref, w2_ref, b2_ref, out_ref,
                         acc_ref):
    """One (batch-tile, K-tile) grid step — fallback for very large H.

    W2/biases have constant index_maps (fetched once for the whole kernel);
    W1's index_map varies with k, so its K-tiles are re-streamed from HBM once
    per batch tile — the wrapper keeps bb as large as VMEM allows to shrink
    that traffic.
    """
    k = pl.program_id(1)

    @pl.when(k == 0)
    def _init():
        acc_ref[...] = jnp.zeros_like(acc_ref)

    acc_ref[...] += jnp.dot(x_ref[...], w1_ref[...],
                            preferred_element_type=jnp.float32)

    @pl.when(k == pl.num_programs(1) - 1)
    def _finalize():
        h = jnp.tanh(acc_ref[...] + b1_ref[...].astype(jnp.float32))
        y = jnp.dot(h.astype(w2_ref.dtype), w2_ref[...],
                    preferred_element_type=jnp.float32)
        out_ref[...] = (y + b2_ref[...].astype(jnp.float32)).astype(out_ref.dtype)


# ----------------------------------------------------------------------------
# Wrapper
# ----------------------------------------------------------------------------
def _round_up(x, m):
    return ((x + m - 1) // m) * m


def _pad_axis(x, target, axis):
    pad = target - x.shape[axis]
    if pad <= 0:
        return x
    widths = [(0, 0)] * x.ndim
    widths[axis] = (0, pad)
    return jnp.pad(x, widths)


_VMEM_BUDGET = 26 * 1024 * 1024   # conservative vs the 32 MiB scoped cap (v7x-safe)
_VMEM_LIMIT = 32 * 1024 * 1024    # explicit scoped-VMEM limit, safe on v5e/v6e/v7x


@functools.partial(jax.jit,
                   static_argnames=("block_b", "block_k", "compute_dtype",
                                    "_force_k_tiled"))
def qil_bert_classification_head(features, w_dense, b_dense, w_out, b_out, *,
                                 block_b=512, block_k=512,
                                 compute_dtype=jnp.bfloat16,
                                 _force_k_tiled=False):
    """features: (B, S, H).  w_dense: (H, H) (in,out).  w_out: (H, L) (in,out)."""
    B, _, H = features.shape
    L = w_out.shape[1]
    out_dtype = features.dtype
    itemsize = jnp.dtype(compute_dtype).itemsize

    # CLS-token slice + compute-dtype cast (dropout = identity at inference).
    x = features[:, 0, :].astype(compute_dtype)               # (B, H)
    w1 = w_dense.astype(compute_dtype)                        # (H, H)
    w2 = w_out.astype(compute_dtype)                          # (H, L)
    b1 = b_dense.astype(jnp.float32).reshape(1, H)
    b2 = b_out.astype(jnp.float32).reshape(1, L)

    # Lane-dense output: pad num_labels up to a multiple of 128.
    Lp = _round_up(max(L, 1), 128)
    w2 = _pad_axis(w2, Lp, 1)                                  # (H, Lp)
    b2 = _pad_axis(b2, Lp, 1)                                  # (1, Lp)

    # ---- adaptive batch tiling ("parallel" axis) ----------------------------
    # >= 2 batch tiles whenever B > 8 (shard across v7x's two TensorCores);
    # bb sized so padding waste stays < 8 rows instead of a whole tile.
    n_b = pl.cdiv(B, block_b)
    if B > 8:
        n_b = max(n_b, 2)
    bb = _round_up(pl.cdiv(B, n_b), 8)

    def resident_footprint(bb_):
        # Conservative: count 2 buffers even for constant-index blocks.
        return (2 * (bb_ * H + H * H + H * Lp + bb_ * Lp) * itemsize
                + 2 * (H + Lp) * 4)

    use_resident = (not _force_k_tiled) and resident_footprint(8) <= _VMEM_BUDGET

    if use_resident:
        # ---- fast path: W1/W2/biases resident, 1-D batch grid ---------------
        while bb > 8 and resident_footprint(bb) > _VMEM_BUDGET:
            bb = max(8, _round_up(bb // 2, 8))
        n_b = pl.cdiv(B, bb)
        B_pad = n_b * bb
        x = _pad_axis(x, B_pad, 0)        # zero rows, sliced off at the end

        cost = pl.CostEstimate(
            flops=int(2 * B_pad * H * H + 2 * B_pad * H * Lp),
            transcendentals=int(B_pad * H),
            bytes_accessed=int((B_pad * H + H * H + H * Lp) * itemsize
                               + (H + Lp) * 4
                               + B_pad * Lp * jnp.dtype(out_dtype).itemsize),
        )

        out = pl.pallas_call(
            _head_resident_kernel,
            out_shape=jax.ShapeDtypeStruct((B_pad, Lp), out_dtype),
            grid_spec=pltpu.PrefetchScalarGridSpec(
                num_scalar_prefetch=0,
                grid=(n_b,),
                in_specs=[
                    pl.BlockSpec((bb, H), lambda b: (b, 0)),   # CLS activations
                    pl.BlockSpec((H, H), lambda b: (0, 0)),    # W1 (resident)
                    pl.BlockSpec((1, H), lambda b: (0, 0)),    # dense bias
                    pl.BlockSpec((H, Lp), lambda b: (0, 0)),   # W2 (resident)
                    pl.BlockSpec((1, Lp), lambda b: (0, 0)),   # out_proj bias
                ],
                out_specs=pl.BlockSpec((bb, Lp), lambda b: (b, 0)),
            ),
            compiler_params=pltpu.CompilerParams(
                dimension_semantics=("parallel",),
                vmem_limit_bytes=_VMEM_LIMIT,
            ),
            cost_estimate=cost,
        )(x, w1, b1, w2, b2)
        return out[:B, :L]

    # ---- fallback: K-tiled dense matmul for very large H --------------------
    # Zero-pad the contraction dim so a 128-multiple tile divides it
    # (exact: zero rows/cols contribute nothing).
    Kp = H if H % 128 == 0 else _round_up(H, 128)
    x = _pad_axis(x, Kp, 1)
    w1 = _pad_axis(w1, Kp, 0)

    def k_tiled_footprint(bb_, bk_):
        return (2 * (bb_ * bk_ + bk_ * H + H * Lp + bb_ * Lp) * itemsize
                + 2 * (H + Lp) * 4
                + bb_ * H * 4)            # f32 accumulator scratch

    prefs = [c for c in dict.fromkeys((block_k, 512, 256, 128)) if Kp % c == 0]
    bk = prefs[-1]
    for c in prefs:
        if k_tiled_footprint(8, c) <= _VMEM_BUDGET:
            bk = c
            break
    # Keep bb as large as the budget allows: W1 refetch traffic is n_b * Kp * H.
    while bb > 8 and k_tiled_footprint(bb, bk) > _VMEM_BUDGET:
        bb = max(8, _round_up(bb // 2, 8))
    n_b = pl.cdiv(B, bb)
    n_k = Kp // bk
    B_pad = n_b * bb
    x = _pad_axis(x, B_pad, 0)

    cost = pl.CostEstimate(
        flops=int(2 * B_pad * Kp * H + 2 * B_pad * H * Lp),
        transcendentals=int(B_pad * H),
        bytes_accessed=int((B_pad * Kp + n_b * Kp * H + H * Lp) * itemsize
                           + (H + Lp) * 4
                           + B_pad * Lp * jnp.dtype(out_dtype).itemsize),
    )

    out = pl.pallas_call(
        _head_k_tiled_kernel,
        out_shape=jax.ShapeDtypeStruct((B_pad, Lp), out_dtype),
        grid_spec=pltpu.PrefetchScalarGridSpec(
            num_scalar_prefetch=0,
            grid=(n_b, n_k),
            in_specs=[
                pl.BlockSpec((bb, bk), lambda b, k: (b, k)),   # CLS activations
                # W1 K-tile, full output width; index varies with k, so these
                # tiles are re-streamed once per batch tile (not resident).
                pl.BlockSpec((bk, H), lambda b, k: (k, 0)),
                pl.BlockSpec((1, H), lambda b, k: (0, 0)),     # dense bias
                pl.BlockSpec((H, Lp), lambda b, k: (0, 0)),    # W2 (resident)
                pl.BlockSpec((1, Lp), lambda b, k: (0, 0)),    # out_proj bias
            ],
            out_specs=pl.BlockSpec((bb, Lp), lambda b, k: (b, 0)),
            scratch_shapes=[pltpu.VMEM((bb, H), jnp.float32)],  # dense accumulator
        ),
        compiler_params=pltpu.CompilerParams(
            dimension_semantics=("parallel", "arbitrary"),
            vmem_limit_bytes=_VMEM_LIMIT,
        ),
        cost_estimate=cost,
    )(x, w1, b1, w2, b2)
    return out[:B, :L]


# ----------------------------------------------------------------------------
# Self-test
# ----------------------------------------------------------------------------
if __name__ == "__main__":
    def make_inputs(key, B, S, H, L, dtype=jnp.float32):
        k_feat, k_w1, k_b1, k_w2, k_b2 = jax.random.split(key, 5)
        bound = 1.0 / (H ** 0.5)
        features = jax.random.normal(k_feat, (B, S, H), dtype=jnp.float32)
        w1 = jax.random.uniform(k_w1, (H, H), jnp.float32, -bound, bound)
        b1 = jax.random.uniform(k_b1, (H,), jnp.float32, -bound, bound)
        w2 = jax.random.uniform(k_w2, (H, L), jnp.float32, -bound, bound)
        b2 = jax.random.uniform(k_b2, (L,), jnp.float32, -bound, bound)
        return features.astype(dtype), w1.astype(dtype), b1, w2.astype(dtype), b2

    def ref_forward(features, w1, b1, w2, b2):
        h = features[:, 0, :].astype(jnp.float32)
        h = jnp.tanh(h @ w1.astype(jnp.float32) + b1)
        return h @ w2.astype(jnp.float32) + b2

    # 1) small shapes from the module (resident fast path), exact f32 compute.
    f, w1, b1, w2, b2 = make_inputs(jax.random.PRNGKey(0), B=2, S=8, H=32, L=4)
    out = jax.block_until_ready(
        qil_bert_classification_head(f, w1, b1, w2, b2,
                                     compute_dtype=jnp.float32))
    ref = ref_forward(f, w1, b1, w2, b2)
    assert out.shape == (2, 4), out.shape
    assert jnp.allclose(out, ref, atol=1e-5, rtol=1e-5), "f32 resident mismatch"

    # 2) multi-batch-tile resident path (B=10 -> two batch tiles), f32.
    f, w1, b1, w2, b2 = make_inputs(jax.random.PRNGKey(1), B=10, S=8, H=256, L=3)
    out = jax.block_until_ready(
        qil_bert_classification_head(f, w1, b1, w2, b2,
                                     compute_dtype=jnp.float32))
    ref = ref_forward(f, w1, b1, w2, b2)
    assert out.shape == (10, 3), out.shape
    assert jnp.allclose(out, ref, atol=1e-4, rtol=1e-4), "multi-tile mismatch"

    # 3) K-tiled fallback path (forced): batch x K grid, f32 VMEM accumulator.
    out = jax.block_until_ready(
        qil_bert_classification_head(f, w1, b1, w2, b2, block_k=128,
                                     compute_dtype=jnp.float32,
                                     _force_k_tiled=True))
    assert jnp.allclose(out, ref, atol=1e-4, rtol=1e-4), "k-tiled path mismatch"

    # 4) default bf16 compute path (f32 params -> bf16 MXU operands, f32 accum).
    out = jax.block_until_ready(qil_bert_classification_head(f, w1, b1, w2, b2))
    assert jnp.allclose(out, ref, atol=5e-2, rtol=5e-2), "bf16 compute mismatch"

    # 5) bf16 inputs end-to-end.
    fb, w1b, b1b, w2b, b2b = make_inputs(jax.random.PRNGKey(0), B=2, S=8, H=32,
                                         L=4, dtype=jnp.bfloat16)
    out = jax.block_until_ready(
        qil_bert_classification_head(fb, w1b, b1b, w2b, b2b))
    refb = ref_forward(fb, w1b, b1b, w2b, b2b)
    assert jnp.allclose(out.astype(jnp.float32), refb, atol=5e-2, rtol=5e-2), \
        "bf16 input mismatch"

    print("KERNEL_OK")
</pallas_src>

<mosaic_0001>
module attributes {stable_mosaic.version = 11 : i64} {
  func.func @_head_resident_kernel(%arg0: i32, %arg1: memref<8x32xf32, #tpu.memory_space<vmem>>, %arg2: memref<32x32xf32, #tpu.memory_space<vmem>>, %arg3: memref<1x32xf32, #tpu.memory_space<vmem>>, %arg4: memref<32x128xf32, #tpu.memory_space<vmem>>, %arg5: memref<1x128xf32, #tpu.memory_space<vmem>>, %arg6: memref<8x128xf32, #tpu.memory_space<vmem>>) attributes {dimension_semantics = [#tpu.dimension_semantics<parallel>], iteration_bounds = array<i64: 1>, scalar_prefetch = 0 : i64, scratch_operands = 0 : i64, tpu.core_type = #tpu.core_type<tc>, window_params = [{transform_indices = @transform_0, window_bounds = array<i64: 8, 32>}, {pipeline_mode = #tpu.pipeline_mode<synchronous>, transform_indices = @transform_1, window_bounds = array<i64: 32, 32>}, {pipeline_mode = #tpu.pipeline_mode<synchronous>, transform_indices = @transform_2, window_bounds = array<i64: 1, 32>}, {pipeline_mode = #tpu.pipeline_mode<synchronous>, transform_indices = @transform_3, window_bounds = array<i64: 32, 128>}, {pipeline_mode = #tpu.pipeline_mode<synchronous>, transform_indices = @transform_4, window_bounds = array<i64: 1, 128>}, {transform_indices = @transform_5, window_bounds = array<i64: 8, 128>}]} {
    %c0 = arith.constant 0 : index
    %c0_0 = arith.constant 0 : index
    %0 = vector.load %arg1[%c0, %c0_0] : memref<8x32xf32, #tpu.memory_space<vmem>>, vector<8x32xf32>
    %c0_1 = arith.constant 0 : index
    %c0_2 = arith.constant 0 : index
    %1 = vector.load %arg2[%c0_1, %c0_2] : memref<32x32xf32, #tpu.memory_space<vmem>>, vector<32x32xf32>
    %cst = arith.constant dense<0.000000e+00> : vector<8x32xf32>
    %2 = tpu.matmul %0, %1, %cst {dimension_numbers = #tpu.dot_dimension_numbers<[1], [0], [0], [1], [0, 0, 1, 1], [], []>} : vector<8x32xf32>, vector<32x32xf32>, vector<8x32xf32> -> vector<8x32xf32>
    %c0_3 = arith.constant 0 : index
    %c0_4 = arith.constant 0 : index
    %3 = vector.load %arg3[%c0_3, %c0_4] : memref<1x32xf32, #tpu.memory_space<vmem>>, vector<1x32xf32>
    %4 = vector.broadcast %3 : vector<1x32xf32> to vector<8x32xf32>
    %5 = arith.addf %2, %4 : vector<8x32xf32>
    %6 = math.tanh %5 : vector<8x32xf32>
    %c0_5 = arith.constant 0 : index
    %c0_6 = arith.constant 0 : index
    %7 = vector.load %arg4[%c0_5, %c0_6] : memref<32x128xf32, #tpu.memory_space<vmem>>, vector<32x128xf32>
    %cst_7 = arith.constant dense<0.000000e+00> : vector<8x128xf32>
    %8 = tpu.matmul %6, %7, %cst_7 {dimension_numbers = #tpu.dot_dimension_numbers<[1], [0], [0], [1], [0, 0, 1, 1], [], []>} : vector<8x32xf32>, vector<32x128xf32>, vector<8x128xf32> -> vector<8x128xf32>
    %c0_8 = arith.constant 0 : index
    %c0_9 = arith.constant 0 : index
    %9 = vector.load %arg5[%c0_8, %c0_9] : memref<1x128xf32, #tpu.memory_space<vmem>>, vector<1x128xf32>
    %10 = vector.broadcast %9 : vector<1x128xf32> to vector<8x128xf32>
    %11 = arith.addf %8, %10 : vector<8x128xf32>
    %c0_10 = arith.constant 0 : index
    %c0_11 = arith.constant 0 : index
    %12 = vector.load %arg6[%c0_10, %c0_11] : memref<8x128xf32, #tpu.memory_space<vmem>>, vector<8x128xf32>
    tpu.vector_store %arg6[%c0_10, %c0_11], %11 {strides = array<i32>} : memref<8x128xf32, #tpu.memory_space<vmem>>, vector<8x128xf32>,
    return
  }
  func.func @transform_0(%arg0: i32) -> (i32, i32) {
    %c0_i32 = arith.constant 0 : i32
    %c0_i32_0 = arith.constant 0 : i32
    return %arg0, %c0_i32 : i32, i32
  }
  func.func @transform_1(%arg0: i32) -> (i32, i32) {
    %c0_i32 = arith.constant 0 : i32
    %c0_i32_0 = arith.constant 0 : i32
    %c0_i32_1 = arith.constant 0 : i32
    return %c0_i32, %c0_i32_0 : i32, i32
  }
  func.func @transform_2(%arg0: i32) -> (i32, i32) {
    %c0_i32 = arith.constant 0 : i32
    %c0_i32_0 = arith.constant 0 : i32
    %c0_i32_1 = arith.constant 0 : i32
    return %c0_i32, %c0_i32_0 : i32, i32
  }
  func.func @transform_3(%arg0: i32) -> (i32, i32) {
    %c0_i32 = arith.constant 0 : i32
    %c0_i32_0 = arith.constant 0 : i32
    %c0_i32_1 = arith.constant 0 : i32
    return %c0_i32, %c0_i32_0 : i32, i32
  }
  func.func @transform_4(%arg0: i32) -> (i32, i32) {
    %c0_i32 = arith.constant 0 : i32
    %c0_i32_0 = arith.constant 0 : i32
    %c0_i32_1 = arith.constant 0 : i32
    return %c0_i32, %c0_i32_0 : i32, i32
  }
  func.func @transform_5(%arg0: i32) -> (i32, i32) {
    %c0_i32 = arith.constant 0 : i32
    %c0_i32_0 = arith.constant 0 : i32
    return %arg0, %c0_i32 : i32, i32
  }
}

</mosaic_0001>

<llo_original>
// kernel: qil_bert_classification_head.1
$region0: #{qil_bert_classification_head.1}
  #allocation0 [shape = 'u32[]', space=smem, size = 0x4, offset = 0x4, fixed_abs, tag = 'smem constant byte address 0x4 - core index']
  #allocation1 [shape = 'u32[144,128]{1,0:T(1,128)}', space=vmem, size = 0x12000, scoped, tag = 'internal scratch']
  %s0 = inlined_call_operand.vmem [shape: f32[8,32], index: 0, kind: input, shape index: {}]
  %s1 = inlined_call_operand.vmem [shape: f32[32,32], index: 1, kind: input, shape index: {}]
  %s2 = inlined_call_operand.vmem [shape: f32[1,32], index: 2, kind: input, shape index: {}]
  %s3 = inlined_call_operand.vmem [shape: f32[32,128], index: 3, kind: input, shape index: {}]
  %s4 = inlined_call_operand.vmem [shape: f32[1,128], index: 4, kind: input, shape index: {}]
  %s5 = inlined_call_operand.vmem [shape: f32[8,128], index: 5, kind: output, shape index: {}]
  %s6 = sld [smem:[#allocation0]]
  $region30: #{qil_bert_classification_head.1} parent=0
    _
  %s8 = ssub.s32 1, %s6
  %s9 = scalar_select 0, %s8, %s6
  // Predicated region
  $region2: #{qil_bert_classification_head.1} parent=0 // pred_check
    _
  $region3: #{qil_bert_classification_head.1} parent=0 // pred_check_branch
    %11 = sbr.rel (0) target = $region5
  $region4: #{qil_bert_classification_head.1} parent=0 // pred_region
    _
  $region5: #{qil_bert_classification_head.1} parent=0 // pred_fallthru
    _
  // Predicated region
  $region6: #{qil_bert_classification_head.1} parent=0 // pred_check
    _
  $region7: #{qil_bert_classification_head.1} parent=0 // pred_check_branch
    %13 = sbr.rel (0) target = $region9
  $region8: #{qil_bert_classification_head.1} parent=0 // pred_region
    _
  $region9: #{qil_bert_classification_head.1} parent=0 // pred_fallthru
    _
  // Predicated region
  $region10: #{qil_bert_classification_head.1} parent=0 // pred_check
    _
  $region11: #{qil_bert_classification_head.1} parent=0 // pred_check_branch
    %15 = sbr.rel (0) target = $region13
  $region12: #{qil_bert_classification_head.1} parent=0 // pred_region
    _
  $region13: #{qil_bert_classification_head.1} parent=0 // pred_fallthru
    _
  // Predicated region
  $region14: #{qil_bert_classification_head.1} parent=0 // pred_check
    _
  $region15: #{qil_bert_classification_head.1} parent=0 // pred_check_branch
    %17 = sbr.rel (0) target = $region17
  $region16: #{qil_bert_classification_head.1} parent=0 // pred_region
    _
  $region17: #{qil_bert_classification_head.1} parent=0 // pred_fallthru
    _
  // Predicated region
  $region18: #{qil_bert_classification_head.1} parent=0 // pred_check
    _
  $region19: #{qil_bert_classification_head.1} parent=0 // pred_check_branch
    %19 = sbr.rel (0) target = $region21
  $region20: #{qil_bert_classification_head.1} parent=0 // pred_region
    _
  $region21: #{qil_bert_classification_head.1} parent=0 // pred_fallthru
    _
  %v20 = vld [vmem:[%s0] sm:$0xff]
  %v21 = vld [vmem:[%s1] sm:$0xff]
  %v22 = vld [vmem:[%s1 + $0x8] sm:$0xff]
  %v23 = vld [vmem:[%s1 + $0x10] sm:$0xff]
  %v24 = vld [vmem:[%s1 + $0x18] sm:$0xff]
  %v25 = vld [vmem:[%s2] sm:$0x1]
  %v27 = vlaneseq
  %v28 = vshrl.u32 %v27, 7
  %v29 = vsub.s32 0, %v28
  %v30 = vrot.slane %v25, %v29
  %vm32 = vcmask 261120
  %v34 = vsel %vm32, %v20, 0
  %36 = vmatprep.subr.mxu0 0.0
  %37 = vmatpush1.msra.mxu0 %v21
  %38 = vmatprep.subr.mxu0 0.0
  %39 = vmatpush1.msra.mxu0 %v22
  %40 = vmatprep.subr.mxu0 0.0
  %41 = vmatpush1.msra.mxu0 %v23
  %42 = vmatprep.subr.mxu0 0.0
  %43 = vmatpush1.msra.mxu0 %v24
  %44 = vmatprep.subr.mxu0 0.0
  %45 = vmatpush1.msra.mxu0 0.0
  %46 = vmatprep.subr.mxu0 0.0
  %47 = vmatpush1.msra.mxu0 0.0
  %48 = vmatprep.subr.mxu0 0.0
  %49 = vmatpush1.msra.mxu0 0.0
  %50 = vmatprep.subr.mxu0 0.0
  %51 = vmatpush1.msra.mxu0 0.0
  %52 = vmatprep.subr.mxu0 0.0
  %53 = vmatpush1.msra.mxu0 0.0
  %54 = vmatprep.subr.mxu0 0.0
  %55 = vmatpush1.msra.mxu0 0.0
  %56 = vmatprep.subr.mxu0 0.0
  %57 = vmatpush1.msra.mxu0 0.0
  %58 = vmatprep.subr.mxu0 0.0
  %59 = vmatpush1.msra.mxu0 0.0
  %60 = vmatprep.subr.mxu0 0.0
  %61 = vmatpush1.msra.mxu0 0.0
  %62 = vmatprep.subr.mxu0 0.0
  %63 = vmatpush1.msra.mxu0 0.0
  %64 = vmatprep.subr.mxu0 0.0
  %65 = vmatpush1.msra.mxu0 0.0
  %66 = vmatprep.subr.mxu0 0.0
  %67 = vmatpush1.msra.mxu0 0.0
  %68 = vmatprep.subr.mxu0 0.0
  %69 = vmatpush1.msra.mxu0 0.0
  %70 = vmatprep.subr.mxu0 0.0
  %71 = vmatpush1.msra.mxu0 0.0
  %72 = vmatprep.subr.mxu0 0.0
  %73 = vmatpush1.msra.mxu0 0.0
  %74 = vmatprep.subr.mxu0 0.0
  %75 = vmatpush1.msra.mxu0 0.0
  %76 = vmatprep.subr.mxu0 0.0
  %77 = vmatpush1.msra.mxu0 0.0
  %78 = vmatprep.subr.mxu0 0.0
  %79 = vmatpush1.msra.mxu0 0.0
  %80 = vmatprep.subr.mxu0 0.0
  %81 = vmatpush1.msra.mxu0 0.0
  %82 = vmatprep.subr.mxu0 0.0
  %83 = vmatpush1.msra.mxu0 0.0
  %84 = vmatprep.subr.mxu0 0.0
  %85 = vmatpush1.msra.mxu0 0.0
  %86 = vmatprep.subr.mxu0 0.0
  %87 = vmatpush1.msra.mxu0 0.0
  %88 = vmatprep.subr.mxu0 0.0
  %89 = vmatpush1.msra.mxu0 0.0
  %90 = vmatprep.subr.mxu0 0.0
  %91 = vmatpush1.msra.mxu0 0.0
  %92 = vmatprep.subr.mxu0 0.0
  %93 = vmatpush1.msra.mxu0 0.0
  %94 = vmatprep.subr.mxu0 0.0
  %95 = vmatpush1.msra.mxu0 0.0
  %96 = vmatprep.subr.mxu0 0.0
  %97 = vmatpush1.msra.mxu0 0.0
  %98 = vmatprep.subr.mxu0 0.0
  %99 = vmatpush1.msra.mxu0 0.0
  %100 = vmatprep.mubr.f32.mxu0 0.0
  %101 = vmatmul.mubr.f32.gmra.mrb[0].mxu0 %v34
  %v102 = vpop.f32.mrb[0].mxu0
  %v103 = vadd.f32 %v30, %v102
  %v104 = vpop.f32.mrb[0].mxu0
  %105 = vdwg.mxu0
  %v106 = vtanh.pop %v103
  %v107 = vld [vmem:[%s3] sm:$0xff]
  %v108 = vld [vmem:[%s3 + $0x8] sm:$0xff]
  %v109 = vld [vmem:[%s3 + $0x10] sm:$0xff]
  %v110 = vld [vmem:[%s3 + $0x18] sm:$0xff]
  %v111 = vld [vmem:[%s4] sm:$0x1]
  %v113 = vlaneseq
  %v114 = vshrl.u32 %v113, 7
  %v115 = vsub.s32 0, %v114
  %v116 = vrot.slane %v111, %v115
  %v119 = vsel %vm32, %v106, 0
  %121 = vmatprep.subr.mxu0 0.0
  %122 = vmatpush1.msra.mxu0 %v107
  %123 = vmatprep.subr.mxu0 0.0
  %124 = vmatpush1.msra.mxu0 %v108
  %125 = vmatprep.subr.mxu0 0.0
  %126 = vmatpush1.msra.mxu0 %v109
  %127 = vmatprep.subr.mxu0 0.0
  %128 = vmatpush1.msra.mxu0 %v110
  %129 = vmatprep.subr.mxu0 0.0
  %130 = vmatpush1.msra.mxu0 0.0
  %131 = vmatprep.subr.mxu0 0.0
  %132 = vmatpush1.msra.mxu0 0.0
  %133 = vmatprep.subr.mxu0 0.0
  %134 = vmatpush1.msra.mxu0 0.0
  %135 = vmatprep.subr.mxu0 0.0
  %136 = vmatpush1.msra.mxu0 0.0
  %137 = vmatprep.subr.mxu0 0.0
  %138 = vmatpush1.msra.mxu0 0.0
  %139 = vmatprep.subr.mxu0 0.0
  %140 = vmatpush1.msra.mxu0 0.0
  %141 = vmatprep.subr.mxu0 0.0
  %142 = vmatpush1.msra.mxu0 0.0
  %143 = vmatprep.subr.mxu0 0.0
  %144 = vmatpush1.msra.mxu0 0.0
  %145 = vmatprep.subr.mxu0 0.0
  %146 = vmatpush1.msra.mxu0 0.0
  %147 = vmatprep.subr.mxu0 0.0
  %148 = vmatpush1.msra.mxu0 0.0
  %149 = vmatprep.subr.mxu0 0.0
  %150 = vmatpush1.msra.mxu0 0.0
  %151 = vmatprep.subr.mxu0 0.0
  %152 = vmatpush1.msra.mxu0 0.0
  %153 = vmatprep.subr.mxu0 0.0
  %154 = vmatpush1.msra.mxu0 0.0
  %155 = vmatprep.subr.mxu0 0.0
  %156 = vmatpush1.msra.mxu0 0.0
  %157 = vmatprep.subr.mxu0 0.0
  %158 = vmatpush1.msra.mxu0 0.0
  %159 = vmatprep.subr.mxu0 0.0
  %160 = vmatpush1.msra.mxu0 0.0
  %161 = vmatprep.subr.mxu0 0.0
  %162 = vmatpush1.msra.mxu0 0.0
  %163 = vmatprep.subr.mxu0 0.0
  %164 = vmatpush1.msra.mxu0 0.0
  %165 = vmatprep.subr.mxu0 0.0
  %166 = vmatpush1.msra.mxu0 0.0
  %167 = vmatprep.subr.mxu0 0.0
  %168 = vmatpush1.msra.mxu0 0.0
  %169 = vmatprep.subr.mxu0 0.0
  %170 = vmatpush1.msra.mxu0 0.0
  %171 = vmatprep.subr.mxu0 0.0
  %172 = vmatpush1.msra.mxu0 0.0
  %173 = vmatprep.subr.mxu0 0.0
  %174 = vmatpush1.msra.mxu0 0.0
  %175 = vmatprep.subr.mxu0 0.0
  %176 = vmatpush1.msra.mxu0 0.0
  %177 = vmatprep.subr.mxu0 0.0
  %178 = vmatpush1.msra.mxu0 0.0
  %179 = vmatprep.subr.mxu0 0.0
  %180 = vmatpush1.msra.mxu0 0.0
  %181 = vmatprep.subr.mxu0 0.0
  %182 = vmatpush1.msra.mxu0 0.0
  %183 = vmatprep.subr.mxu0 0.0
  %184 = vmatpush1.msra.mxu0 0.0
  %185 = vmatprep.mubr.f32.mxu0 0.0
  %186 = vmatmul.mubr.f32.gmra.mrb[0].mxu0 %v119
  %v187 = vpop.f32.mrb[0].mxu0
  %v188 = vadd.f32 %v116, %v187
  %v189 = vpop.f32.mrb[0].mxu0
  %190 = vdwg.mxu0
  %191 = vst [vmem:[%s5] sm:$0xff] %v188
  // Predicated region
  $region22: #{qil_bert_classification_head.1} parent=0 // pred_check
    _
  $region23: #{qil_bert_classification_head.1} parent=0 // pred_check_branch
    %193 = sbr.rel (0) target = $region25
  $region24: #{qil_bert_classification_head.1} parent=0 // pred_region
    _
  $region25: #{qil_bert_classification_head.1} parent=0 // pred_fallthru
    _
  // Predicated region
  $region26: #{qil_bert_classification_head.1} parent=0 // pred_check
    _
  $region27: #{qil_bert_classification_head.1} parent=0 // pred_check_branch
    %195 = sbr.rel (0) target = $region29
  $region28: #{qil_bert_classification_head.1} parent=0 // pred_region
    _
  $region29: #{qil_bert_classification_head.1} parent=0 // pred_fallthru
    _

</llo_original>
